<compile_context>
chip_gen: v6e
topology: v6e:2x2x1
jax: 0.10.0
libtpu: 0.0.40
codegen_flags: <defaults>
</compile_context>

<pallas_src>
import jax
import jax.numpy as jnp
from jax.experimental import pallas as pl
from jax.experimental.pallas import tpu as pltpu


def _round_up(x, m):
    return ((x + m - 1) // m) * m


# --------------------------------------------------------------------------
# Parameter construction (host-side, done once)
# --------------------------------------------------------------------------
def init_qnet_params(key, input_size, hidden_sizes, output_size):
    """PyTorch-nn.Linear-style uniform init; weights stored as (in, out)."""
    sizes = [input_size] + list(hidden_sizes) + [output_size]
    params = []
    for i in range(len(sizes) - 1):
        fan_in, fan_out = sizes[i], sizes[i + 1]
        k = 1.0 / jnp.sqrt(jnp.float32(fan_in))
        key, kw, kb = jax.random.split(key, 3)
        w = jax.random.uniform(kw, (fan_in, fan_out), jnp.float32, -k, k)
        b = jax.random.uniform(kb, (fan_out,), jnp.float32, -k, k)
        params.append((w, b))
    return params


def pad_qnet_params(params, weight_dtype=jnp.bfloat16, lane_multiple=128):
    """Zero-pad every feature dim to a multiple of `lane_multiple`.  Call ONCE
    (at init or whenever the weights are updated), not per forward call.

    weight_dtype=jnp.bfloat16 (default) halves weight DMA bytes and runs the
    MXU at its native bf16 rate; accumulation stays f32 in the kernel.  Use
    jnp.float32 for a tighter match to an f32 reference.  Biases stay f32.
    lane_multiple=256 is worth trying on v6e/v7x once hidden sizes are large
    enough to be MXU-bound (their MXUs are 256x256); 128 is fine for this net.
    """
    padded = []
    for w, b in params:
        ip = _round_up(w.shape[0], lane_multiple)
        op = _round_up(w.shape[1], lane_multiple)
        wp = (
            jnp.zeros((ip, op), weight_dtype)
            .at[: w.shape[0], : w.shape[1]]
            .set(w.astype(weight_dtype))
        )
        bp = jnp.zeros((1, op), jnp.float32).at[0, : b.shape[0]].set(b)
        padded.append((wp, bp))
    return padded


# --------------------------------------------------------------------------
# Kernel
# --------------------------------------------------------------------------
def _make_kernel(n_layers, out_size, want_q):
    """Ref order: x, (w0, b0), ..., (w{n-1}, b{n-1}), [q_out], idx_out."""

    def kernel(*refs):
        x_ref = refs[0]
        off = 1 + 2 * n_layers
        if want_q:
            q_ref = refs[off]
            idx_ref = refs[off + 1]
        else:
            q_ref = None
            idx_ref = refs[off]

        h = x_ref[...]  # (tile_b, in_size) -- un-padded in HBM
        for layer in range(n_layers):
            w = refs[1 + 2 * layer][...]
            b = refs[2 + 2 * layer][...]
            k_pad = w.shape[0]
            if h.shape[-1] != k_pad:
                # Zero-extend the activation lanes in VMEM (layer 0 only: x is
                # stored un-padded in HBM so its DMA is not inflated; the
                # padded weight rows are zero, so this is exact).
                h = jnp.concatenate(
                    [h, jnp.zeros((h.shape[0], k_pad - h.shape[-1]), h.dtype)],
                    axis=-1,
                )
            # MXU matmul; activations cast to the weight dtype (no-op for f32,
            # native bf16 rate when weights are bf16), accumulate in f32.
            h = jnp.dot(h.astype(w.dtype), w, preferred_element_type=jnp.float32) + b
            if layer < n_layers - 1:
                h = jnp.maximum(h, 0.0)  # ReLU  (VPU)
            else:
                h = jnp.tanh(h)          # Tanh  (EUP slot -> effectively free)

        # Masked argmax over the real output columns (padded lanes excluded).
        col = jax.lax.broadcasted_iota(jnp.int32, h.shape, 1)
        neg = jnp.float32(-3.4e38)
        qm = jnp.where(col < out_size, h, neg)
        maxv = jnp.max(qm, axis=-1, keepdims=True)           # XLU reduce
        big = jnp.int32(h.shape[1])
        # first index attaining the max (matches torch.argmax tie-breaking);
        # `qm == maxv` is exact because maxv is taken from qm itself.
        idx = jnp.min(jnp.where(qm == maxv, col, big), axis=-1, keepdims=True)

        if want_q:
            q_ref[...] = h
        # single lane-dense int32 block (tile_b, 128), not a full out_pad store
        idx_ref[...] = jnp.broadcast_to(idx, idx_ref.shape)

    return kernel


# --------------------------------------------------------------------------
# Forward wrapper
# --------------------------------------------------------------------------
def _forward_impl(x, padded_params, *, output_size, tile_b, want_q):
    B, in_size = x.shape
    n_layers = len(padded_params)
    out_pad = padded_params[-1][0].shape[1]

    Bp = _round_up(B, tile_b)
    if Bp != B:
        # batch-only padding (in-dim untouched -> no 32x inflation of x)
        x = jnp.pad(x, ((0, Bp - B), (0, 0)))

    flat_args = [x]
    for w, b in padded_params:
        flat_args += [w, b]

    # x block: last dim equals the full array dim (legal even when < 128).
    in_specs = [pl.BlockSpec((tile_b, in_size), lambda i: (i, 0))]
    for w, b in padded_params:
        # Weights/biases: constant index_map -> DMA'd once, VMEM-resident
        # across grid steps.
        in_specs.append(pl.BlockSpec(w.shape, lambda i: (0, 0)))
        in_specs.append(pl.BlockSpec(b.shape, lambda i: (0, 0)))

    out_shapes = []
    out_specs = []
    if want_q:
        out_shapes.append(jax.ShapeDtypeStruct((Bp, out_pad), jnp.float32))
        out_specs.append(pl.BlockSpec((tile_b, out_pad), lambda i: (i, 0)))
    out_shapes.append(jax.ShapeDtypeStruct((Bp, 128), jnp.int32))
    out_specs.append(pl.BlockSpec((tile_b, 128), lambda i: (i, 0)))

    outs = pl.pallas_call(
        _make_kernel(n_layers, output_size, want_q),
        out_shape=tuple(out_shapes),
        grid=(Bp // tile_b,),
        in_specs=in_specs,
        out_specs=tuple(out_specs),
        compiler_params=pltpu.CompilerParams(
            dimension_semantics=("parallel",),
            vmem_limit_bytes=32 * 1024 * 1024,
        ),
    )(*flat_args)

    # Return padded blocks unsliced; callers slice once where consumed.
    return outs


_forward_jit = jax.jit(
    _forward_impl, static_argnames=("output_size", "tile_b", "want_q")
)


def _choose_tile_b(B):
    # Small batches: fixed bucket so varying B in an RL loop produces at most
    # a handful of compiled variants (tile_b is a static jit arg).
    if B <= 256:
        return 128
    # Large batches: big tiles (per-step overhead ~0.35 us; roofline fraction
    # 29% @128 -> 85% @512) while keeping >= 2 grid steps so v7x can split the
    # parallel batch axis across its two TensorCores.
    if B <= 512:
        return 256
    return 512


def qnet_forward(x, padded_params, *, output_size):
    """x: (B, input_size) f32.  padded_params: output of pad_qnet_params.

    Returns (q_pad (Bp, out_pad) f32, idx_pad (Bp, 128) int32).  The greedy
    action for row r is idx_pad[r, 0]; real q-values are
    q_pad[:B, :output_size].  Batch many states per call (vector envs / replay
    batches) to amortize launch and weight DMA.  For B < ~32 single-env action
    selection a plain fused XLA dot chain is just as fast (this kernel is pure
    fixed cost at that size).
    """
    tile_b = _choose_tile_b(x.shape[0])
    q_pad, idx_pad = _forward_jit(
        x, padded_params, output_size=output_size, tile_b=tile_b, want_q=True
    )
    return q_pad, idx_pad


def qnet_select_action(x, padded_params, *, output_size):
    """Action-only variant: skips the q writeback (halves output HBM traffic).
    Returns idx_pad (Bp, 128) int32; the greedy action for row r is
    idx_pad[r, 0]."""
    tile_b = _choose_tile_b(x.shape[0])
    (idx_pad,) = _forward_jit(
        x, padded_params, output_size=output_size, tile_b=tile_b, want_q=False
    )
    return idx_pad


# --------------------------------------------------------------------------
# Reference + demo
# --------------------------------------------------------------------------
def _reference_forward(x, params):
    h = x
    for i, (w, b) in enumerate(params):
        h = h @ w + b
        h = jnp.maximum(h, 0.0) if i < len(params) - 1 else jnp.tanh(h)
    return h, jnp.argmax(h, axis=-1).astype(jnp.int32)


if __name__ == "__main__":
    # Small shapes consistent with the module: state vector -> hidden MLP -> actions.
    input_size = 4
    hidden_sizes = [32, 32]
    output_size = 4
    batch = 8

    key = jax.random.PRNGKey(0)
    kp, kx, kx2 = jax.random.split(key, 3)
    params = init_qnet_params(kp, input_size, hidden_sizes, output_size)
    x = jax.random.normal(kx, (batch, input_size), jnp.float32)
    q_ref, act_ref = _reference_forward(x, params)

    # ---- f32 weights: tight check against the f32 reference -------------
    params_f32 = pad_qnet_params(params, weight_dtype=jnp.float32)
    q_pad, idx_pad = qnet_forward(x, params_f32, output_size=output_size)
    q_pad = jax.block_until_ready(q_pad)
    idx_pad = jax.block_until_ready(idx_pad)
    q = q_pad[:batch, :output_size]
    act = idx_pad[:batch, 0]
    assert jnp.allclose(q, q_ref, atol=1e-4, rtol=1e-4), "f32 q-value mismatch"
    assert jnp.array_equal(act, act_ref), "f32 argmax mismatch"

    # ---- bf16 weights (default / production path): loose tolerance ------
    params_bf16 = pad_qnet_params(params)  # bf16 by default
    q_pad16, idx_pad16 = qnet_forward(x, params_bf16, output_size=output_size)
    q_pad16 = jax.block_until_ready(q_pad16)
    idx_pad16 = jax.block_until_ready(idx_pad16)
    q16 = q_pad16[:batch, :output_size]
    assert jnp.allclose(q16, q_ref, atol=5e-2, rtol=5e-2), "bf16 q-value mismatch"
    # in-kernel argmax must agree with argmax over the kernel's own q values
    assert jnp.array_equal(
        idx_pad16[:batch, 0], jnp.argmax(q16, axis=-1).astype(jnp.int32)
    ), "bf16 argmax inconsistent with kernel q"

    # ---- action-only variant (no q writeback) ---------------------------
    idx_only = qnet_select_action(x, params_bf16, output_size=output_size)
    idx_only = jax.block_until_ready(idx_only)
    assert jnp.array_equal(idx_only[:batch, 0], idx_pad16[:batch, 0]), \
        "action-only argmax mismatch"

    # ---- larger batch: multi-step parallel grid + batch padding ---------
    big_b = 300  # -> tile_b=256, Bp=512, 2 grid steps
    xb = jax.random.normal(kx2, (big_b, input_size), jnp.float32)
    qb_pad, ib_pad = qnet_forward(xb, params_f32, output_size=output_size)
    qb_pad = jax.block_until_ready(qb_pad)
    ib_pad = jax.block_until_ready(ib_pad)
    qb = qb_pad[:big_b, :output_size]
    ib = ib_pad[:big_b, 0]
    qb_ref, _ = _reference_forward(xb, params)
    assert jnp.allclose(qb, qb_ref, atol=1e-4, rtol=1e-4), "large-batch q mismatch"
    assert jnp.array_equal(ib, jnp.argmax(qb, axis=-1).astype(jnp.int32)), \
        "large-batch argmax inconsistent with kernel q"

    print("KERNEL_OK")
</pallas_src>

<mosaic_0001>
module attributes {stable_mosaic.version = 11 : i64} {
  func.func @kernel(%arg0: i32, %arg1: memref<128x4xf32, #tpu.memory_space<vmem>>, %arg2: memref<128x128xf32, #tpu.memory_space<vmem>>, %arg3: memref<1x128xf32, #tpu.memory_space<vmem>>, %arg4: memref<128x128xf32, #tpu.memory_space<vmem>>, %arg5: memref<1x128xf32, #tpu.memory_space<vmem>>, %arg6: memref<128x128xf32, #tpu.memory_space<vmem>>, %arg7: memref<1x128xf32, #tpu.memory_space<vmem>>, %arg8: memref<128x128xf32, #tpu.memory_space<vmem>>, %arg9: memref<128x128xi32, #tpu.memory_space<vmem>>) attributes {dimension_semantics = [#tpu.dimension_semantics<parallel>], iteration_bounds = array<i64: 1>, scalar_prefetch = 0 : i64, scratch_operands = 0 : i64, tpu.core_type = #tpu.core_type<tc>, window_params = [{transform_indices = @transform_0, window_bounds = array<i64: 128, 4>}, {pipeline_mode = #tpu.pipeline_mode<synchronous>, transform_indices = @transform_1, window_bounds = array<i64: 128, 128>}, {pipeline_mode = #tpu.pipeline_mode<synchronous>, transform_indices = @transform_2, window_bounds = array<i64: 1, 128>}, {pipeline_mode = #tpu.pipeline_mode<synchronous>, transform_indices = @transform_3, window_bounds = array<i64: 128, 128>}, {pipeline_mode = #tpu.pipeline_mode<synchronous>, transform_indices = @transform_4, window_bounds = array<i64: 1, 128>}, {pipeline_mode = #tpu.pipeline_mode<synchronous>, transform_indices = @transform_5, window_bounds = array<i64: 128, 128>}, {pipeline_mode = #tpu.pipeline_mode<synchronous>, transform_indices = @transform_6, window_bounds = array<i64: 1, 128>}, {transform_indices = @transform_7, window_bounds = array<i64: 128, 128>}, {transform_indices = @transform_8, window_bounds = array<i64: 128, 128>}]} {
    %c0 = arith.constant 0 : index
    %c0_0 = arith.constant 0 : index
    %0 = vector.load %arg1[%c0, %c0_0] : memref<128x4xf32, #tpu.memory_space<vmem>>, vector<128x4xf32>
    %c0_1 = arith.constant 0 : index
    %c0_2 = arith.constant 0 : index
    %1 = vector.load %arg2[%c0_1, %c0_2] : memref<128x128xf32, #tpu.memory_space<vmem>>, vector<128x128xf32>
    %c0_3 = arith.constant 0 : index
    %c0_4 = arith.constant 0 : index
    %2 = vector.load %arg3[%c0_3, %c0_4] : memref<1x128xf32, #tpu.memory_space<vmem>>, vector<1x128xf32>
    %cst = arith.constant 0.000000e+00 : f32
    %3 = vector.broadcast %cst : f32 to vector<128x124xf32>
    %4 = tpu.concatenate %0, %3 in 1 : vector<128x4xf32>, vector<128x124xf32> -> vector<128x128xf32>
    %cst_5 = arith.constant dense<0.000000e+00> : vector<128x128xf32>
    %5 = tpu.matmul %4, %1, %cst_5 {dimension_numbers = #tpu.dot_dimension_numbers<[1], [0], [0], [1], [0, 0, 1, 1], [], []>} : vector<128x128xf32>, vector<128x128xf32>, vector<128x128xf32> -> vector<128x128xf32>
    %6 = vector.broadcast %2 : vector<1x128xf32> to vector<128x128xf32>
    %7 = arith.addf %5, %6 : vector<128x128xf32>
    %cst_6 = arith.constant 0.000000e+00 : f32
    %8 = vector.broadcast %cst_6 : f32 to vector<128x128xf32>
    %9 = arith.maximumf %7, %8 : vector<128x128xf32>
    %c0_7 = arith.constant 0 : index
    %c0_8 = arith.constant 0 : index
    %10 = vector.load %arg4[%c0_7, %c0_8] : memref<128x128xf32, #tpu.memory_space<vmem>>, vector<128x128xf32>
    %c0_9 = arith.constant 0 : index
    %c0_10 = arith.constant 0 : index
    %11 = vector.load %arg5[%c0_9, %c0_10] : memref<1x128xf32, #tpu.memory_space<vmem>>, vector<1x128xf32>
    %cst_11 = arith.constant dense<0.000000e+00> : vector<128x128xf32>
    %12 = tpu.matmul %9, %10, %cst_11 {dimension_numbers = #tpu.dot_dimension_numbers<[1], [0], [0], [1], [0, 0, 1, 1], [], []>} : vector<128x128xf32>, vector<128x128xf32>, vector<128x128xf32> -> vector<128x128xf32>
    %13 = vector.broadcast %11 : vector<1x128xf32> to vector<128x128xf32>
    %14 = arith.addf %12, %13 : vector<128x128xf32>
    %cst_12 = arith.constant 0.000000e+00 : f32
    %15 = vector.broadcast %cst_12 : f32 to vector<128x128xf32>
    %16 = arith.maximumf %14, %15 : vector<128x128xf32>
    %c0_13 = arith.constant 0 : index
    %c0_14 = arith.constant 0 : index
    %17 = vector.load %arg6[%c0_13, %c0_14] : memref<128x128xf32, #tpu.memory_space<vmem>>, vector<128x128xf32>
    %c0_15 = arith.constant 0 : index
    %c0_16 = arith.constant 0 : index
    %18 = vector.load %arg7[%c0_15, %c0_16] : memref<1x128xf32, #tpu.memory_space<vmem>>, vector<1x128xf32>
    %cst_17 = arith.constant dense<0.000000e+00> : vector<128x128xf32>
    %19 = tpu.matmul %16, %17, %cst_17 {dimension_numbers = #tpu.dot_dimension_numbers<[1], [0], [0], [1], [0, 0, 1, 1], [], []>} : vector<128x128xf32>, vector<128x128xf32>, vector<128x128xf32> -> vector<128x128xf32>
    %20 = vector.broadcast %18 : vector<1x128xf32> to vector<128x128xf32>
    %21 = arith.addf %19, %20 : vector<128x128xf32>
    %22 = math.tanh %21 : vector<128x128xf32>
    %23 = tpu.iota {dimensions = array<i32: 1>} : vector<128x128xi32>
    %c4_i32 = arith.constant 4 : i32
    %24 = vector.broadcast %c4_i32 : i32 to vector<128x128xi32>
    %25 = arith.cmpi slt, %23, %24 : vector<128x128xi32>
    %cst_18 = arith.constant -3.400000e+38 : f32
    %26 = vector.broadcast %cst_18 : f32 to vector<128x128xf32>
    %27 = arith.select %25, %22, %26 : vector<128x128xi1>, vector<128x128xf32>
    %cst_19 = arith.constant dense<0xFF800000> : vector<128xf32>
    %28 = vector.multi_reduction <maximumf>, %27, %cst_19 [1] : vector<128x128xf32> to vector<128xf32>
    %29 = vector.shape_cast %28 : vector<128xf32> to vector<128x1xf32>
    %30 = vector.broadcast %29 : vector<128x1xf32> to vector<128x128xf32>
    %31 = arith.cmpf oeq, %27, %30 : vector<128x128xf32>
    %c128_i32 = arith.constant 128 : i32
    %32 = vector.broadcast %c128_i32 : i32 to vector<128x128xi32>
    %33 = arith.select %31, %23, %32 : vector<128x128xi1>, vector<128x128xi32>
    %cst_20 = arith.constant dense<2147483647> : vector<128xi32>
    %34 = vector.multi_reduction <minsi>, %33, %cst_20 [1] : vector<128x128xi32> to vector<128xi32>
    %35 = vector.shape_cast %34 : vector<128xi32> to vector<128x1xi32>
    %c0_21 = arith.constant 0 : index
    %c0_22 = arith.constant 0 : index
    %36 = vector.load %arg8[%c0_21, %c0_22] : memref<128x128xf32, #tpu.memory_space<vmem>>, vector<128x128xf32>
    tpu.vector_store %arg8[%c0_21, %c0_22], %22 {strides = array<i32>} : memref<128x128xf32, #tpu.memory_space<vmem>>, vector<128x128xf32>,
    %37 = vector.shape_cast %35 : vector<128x1xi32> to vector<128x1xi32>
    %38 = vector.broadcast %37 : vector<128x1xi32> to vector<128x128xi32>
    %c0_23 = arith.constant 0 : index
    %c0_24 = arith.constant 0 : index
    %39 = vector.load %arg9[%c0_23, %c0_24] : memref<128x128xi32, #tpu.memory_space<vmem>>, vector<128x128xi32>
    tpu.vector_store %arg9[%c0_23, %c0_24], %38 {strides = array<i32>} : memref<128x128xi32, #tpu.memory_space<vmem>>, vector<128x128xi32>,
    return
  }
  func.func @transform_0(%arg0: i32) -> (i32, i32) {
    %c0_i32 = arith.constant 0 : i32
    %c0_i32_0 = arith.constant 0 : i32
    return %arg0, %c0_i32 : i32, i32
  }
  func.func @transform_1(%arg0: i32) -> (i32, i32) {
    %c0_i32 = arith.constant 0 : i32
    %c0_i32_0 = arith.constant 0 : i32
    %c0_i32_1 = arith.constant 0 : i32
    return %c0_i32, %c0_i32_0 : i32, i32
  }
  func.func @transform_2(%arg0: i32) -> (i32, i32) {
    %c0_i32 = arith.constant 0 : i32
    %c0_i32_0 = arith.constant 0 : i32
    %c0_i32_1 = arith.constant 0 : i32
    return %c0_i32, %c0_i32_0 : i32, i32
  }
  func.func @transform_3(%arg0: i32) -> (i32, i32) {
    %c0_i32 = arith.constant 0 : i32
    %c0_i32_0 = arith.constant 0 : i32
    %c0_i32_1 = arith.constant 0 : i32
    return %c0_i32, %c0_i32_0 : i32, i32
  }
  func.func @transform_4(%arg0: i32) -> (i32, i32) {
    %c0_i32 = arith.constant 0 : i32
    %c0_i32_0 = arith.constant 0 : i32
    %c0_i32_1 = arith.constant 0 : i32
    return %c0_i32, %c0_i32_0 : i32, i32
  }
  func.func @transform_5(%arg0: i32) -> (i32, i32) {
    %c0_i32 = arith.constant 0 : i32
    %c0_i32_0 = arith.constant 0 : i32
    %c0_i32_1 = arith.constant 0 : i32
    return %c0_i32, %c0_i32_0 : i32, i32
  }
  func.func @transform_6(%arg0: i32) -> (i32, i32) {
    %c0_i32 = arith.constant 0 : i32
    %c0_i32_0 = arith.constant 0 : i32
    %c0_i32_1 = arith.constant 0 : i32
    return %c0_i32, %c0_i32_0 : i32, i32
  }
  func.func @transform_7(%arg0: i32) -> (i32, i32) {
    %c0_i32 = arith.constant 0 : i32
    %c0_i32_0 = arith.constant 0 : i32
    return %arg0, %c0_i32 : i32, i32
  }
  func.func @transform_8(%arg0: i32) -> (i32, i32) {
    %c0_i32 = arith.constant 0 : i32
    %c0_i32_0 = arith.constant 0 : i32
    return %arg0, %c0_i32 : i32, i32
  }
}

</mosaic_0001>

<llo_original>
// kernel: _forward_impl.1
$region0: #{_forward_impl.1}
  #allocation0 [shape = 'u32[]', space=smem, size = 0x4, offset = 0x4, fixed_abs, tag = 'smem constant byte address 0x4 - core index']
  #allocation1 [shape = 'u32[144,128]{1,0:T(1,128)}', space=vmem, size = 0x12000, scoped, tag = 'internal scratch']
  %s0 = inlined_call_operand.vmem [shape: f32[128,4], index: 0, kind: input, shape index: {}]
  %s1 = inlined_call_operand.vmem [shape: f32[128,128], index: 1, kind: input, shape index: {}]
  %s2 = inlined_call_operand.vmem [shape: f32[1,128], index: 2, kind: input, shape index: {}]
  %s3 = inlined_call_operand.hbm [shape: f32[128,128], index: 3, kind: input, shape index: {}]
  %s4 = inlined_call_operand.vmem [shape: f32[1,128], index: 4, kind: input, shape index: {}]
  %s5 = inlined_call_operand.hbm [shape: f32[128,128], index: 5, kind: input, shape index: {}]
  %s6 = inlined_call_operand.vmem [shape: f32[1,128], index: 6, kind: input, shape index: {}]
  %s7 = inlined_call_operand.hbm [shape: f32[128,128], index: 7, kind: output, shape index: {0}]
  %s8 = inlined_call_operand.hbm [shape: s32[128,128], index: 8, kind: output, shape index: {1}]
  %9 = xla_tuple %s7, %s8
  %s10 = sld [smem:[#allocation0]]
  $region54: #{_forward_impl.1} parent=0
    _
  %s12 = ssub.s32 1, %s10
  %s13 = scalar_select 0, %s12, %s10
  $region1: #{_forward_impl.1} parent=0
    #allocation2 [shape = 'u8[65536]{0}', space=vmem, size = 0x10000, scoped, tag = 'input window, operand 3, single buffered']
    #allocation3 [shape = 's32[1]{0}', space=sflag, size = 0x4, scoped, tag = 'scoped memory for _forward_impl.1']
    #allocation4 [shape = 's32[1]{0}', space=sflag, size = 0x4, scoped, tag = 'scoped memory for _forward_impl.1']
    #allocation5 [shape = 'u8[65536]{0}', space=vmem, size = 0x10000, scoped, tag = 'input window, operand 5, single buffered']
    #allocation6 [shape = 's32[1]{0}', space=sflag, size = 0x4, scoped, tag = 'scoped memory for _forward_impl.1']
    #allocation7 [shape = 'u8[65536]{0}', space=vmem, size = 0x10000, scoped, tag = 'output window, operand 0, single buffered']
    #allocation8 [shape = 'u8[65536]{0}', space=vmem, size = 0x10000, scoped, tag = 'output window, operand 1, single buffered']
    #allocation9 [shape = 's32[1]{0}', space=sflag, size = 0x4, scoped, tag = 'scoped memory for _forward_impl.1']
    %14 = vsyncpa [#allocation3], 0
    %15 = vsyncpa [#allocation6], 0
    %16 = vsyncpa [#allocation4], 0
    %17 = vsyncpa [#allocation9], 0
    // Predicated region
    $region2: #{_forward_impl.1} parent=1 // pred_check
      _
    $region3: #{_forward_impl.1} parent=1 // pred_check_branch
      %19 = sbr.rel (0) target = $region5
    $region4: #{_forward_impl.1} parent=1 // pred_region
      _
    $region5: #{_forward_impl.1} parent=1 // pred_fallthru
      _
    // Predicated region
    $region6: #{_forward_impl.1} parent=1 // pred_check
      _
    $region7: #{_forward_impl.1} parent=1 // pred_check_branch
      %21 = sbr.rel (0) target = $region9
    $region8: #{_forward_impl.1} parent=1 // pred_region
      _
    $region9: #{_forward_impl.1} parent=1 // pred_fallthru
      _
    // Predicated region
    $region10: #{_forward_impl.1} parent=1 // pred_check
      _
    $region11: #{_forward_impl.1} parent=1 // pred_check_branch
      %23 = sbr.rel (0) target = $region13
    $region12: #{_forward_impl.1} parent=1 // pred_region
      _
    $region13: #{_forward_impl.1} parent=1 // pred_fallthru
      _
    // Predicated region
    $region14: #{_forward_impl.1} parent=1 // pred_check
      _
    $region15: #{_forward_impl.1} parent=1 // pred_check_branch
      %25 = sbr.rel (0) target = $region17
    $region16: #{_forward_impl.1} parent=1 // pred_region
      %s27 = ssub.s32 2048, 2048
      %28 = vsyncadd [#allocation3], %s27
      %s29 = sshll.u32 [#allocation2], 4
      %s30 = int_to_ptr.vmem [resolvable:$true] %s29
      %35 = dma.hbm_to_vmem [thread:$0]  %s3, 2048, %s30, [#allocation3], 128, 128, 8
    $region17: #{_forward_impl.1} parent=1 // pred_fallthru
      _
    // Predicated region
    $region18: #{_forward_impl.1} parent=1 // pred_check
      _
    $region19: #{_forward_impl.1} parent=1 // pred_check_branch
      %37 = sbr.rel (0) target = $region21
    $region20: #{_forward_impl.1} parent=1 // pred_region
      _
    $region21: #{_forward_impl.1} parent=1 // pred_fallthru
      _
    // Predicated region
    $region22: #{_forward_impl.1} parent=1 // pred_check
      _
    $region23: #{_forward_impl.1} parent=1 // pred_check_branch
      %39 = sbr.rel (0) target = $region25
    $region24: #{_forward_impl.1} parent=1 // pred_region
      %s41 = ssub.s32 2048, 2048
      %42 = vsyncadd [#allocation6], %s41
      %s43 = sshll.u32 [#allocation5], 4
      %s44 = int_to_ptr.vmem [resolvable:$true] %s43
      %49 = dma.hbm_to_vmem [thread:$0]  %s5, 2048, %s44, [#allocation6], 128, 128, 8
    $region25: #{_forward_impl.1} parent=1 // pred_fallthru
      _
    // Predicated region
    $region26: #{_forward_impl.1} parent=1 // pred_check
      _
    $region27: #{_forward_impl.1} parent=1 // pred_check_branch
      %51 = sbr.rel (0) target = $region29
    $region28: #{_forward_impl.1} parent=1 // pred_region
      _
    $region29: #{_forward_impl.1} parent=1 // pred_fallthru
      _
    // Predicated region
    $region30: #{_forward_impl.1} parent=1 // pred_check
      _
    $region31: #{_forward_impl.1} parent=1 // pred_check_branch
      %53 = sbr.rel (0) target = $region33
    $region32: #{_forward_impl.1} parent=1 // pred_region
      %54 = dma.done [#allocation3], 2048
    $region33: #{_forward_impl.1} parent=1 // pred_fallthru
      _
    // Predicated region
    $region34: #{_forward_impl.1} parent=1 // pred_check
      _
    $region35: #{_forward_impl.1} parent=1 // pred_check_branch
      %56 = sbr.rel (0) target = $region37
    $region36: #{_forward_impl.1} parent=1 // pred_region
      %57 = dma.done [#allocation6], 2048
    $region37: #{_forward_impl.1} parent=1 // pred_fallthru
      _
    %v58 = vld [vmem:[%s0] sm:$0xff]
    %v59 = vld [vmem:[%s0 + $0x8] sm:$0xff]
    %v60 = vld [vmem:[%s0 + $0x10] sm:$0xff]
    %v61 = vld [vmem:[%s0 + $0x18] sm:$0xff]
    %v62 = vld [vmem:[%s0 + $0x20] sm:$0xff]
    %v63 = vld [vmem:[%s0 + $0x28] sm:$0xff]
    %v64 = vld [vmem:[%s0 + $0x30] sm:$0xff]
    %v65 = vld [vmem:[%s0 + $0x38] sm:$0xff]
    %v66 = vld [vmem:[%s0 + $0x40] sm:$0xff]
    %v67 = vld [vmem:[%s0 + $0x48] sm:$0xff]
    %v68 = vld [vmem:[%s0 + $0x50] sm:$0xff]
    %v69 = vld [vmem:[%s0 + $0x58] sm:$0xff]
    %v70 = vld [vmem:[%s0 + $0x60] sm:$0xff]
    %v71 = vld [vmem:[%s0 + $0x68] sm:$0xff]
    %v72 = vld [vmem:[%s0 + $0x70] sm:$0xff]
    %v73 = vld [vmem:[%s0 + $0x78] sm:$0xff]
    %v74 = vld [vmem:[%s1] sm:$0xff]
    %v75 = vld [vmem:[%s1 + $0x8] sm:$0xff]
    %v76 = vld [vmem:[%s1 + $0x10] sm:$0xff]
    %v77 = vld [vmem:[%s1 + $0x18] sm:$0xff]
    %v78 = vld [vmem:[%s1 + $0x20] sm:$0xff]
    %v79 = vld [vmem:[%s1 + $0x28] sm:$0xff]
    %v80 = vld [vmem:[%s1 + $0x30] sm:$0xff]
    %v81 = vld [vmem:[%s1 + $0x38] sm:$0xff]
    %v82 = vld [vmem:[%s1 + $0x40] sm:$0xff]
    %v83 = vld [vmem:[%s1 + $0x48] sm:$0xff]
    %v84 = vld [vmem:[%s1 + $0x50] sm:$0xff]
    %v85 = vld [vmem:[%s1 + $0x58] sm:$0xff]
    %v86 = vld [vmem:[%s1 + $0x60] sm:$0xff]
    %v87 = vld [vmem:[%s1 + $0x68] sm:$0xff]
    %v88 = vld [vmem:[%s1 + $0x70] sm:$0xff]
    %v89 = vld [vmem:[%s1 + $0x78] sm:$0xff]
    %v90 = vld [vmem:[%s2] sm:$0x1]
    %vm91 = vcmask 31744
    %v92 = vsel %vm91, %v58, 0.0
    %v93 = vsel %vm91, %v59, 0.0
    %v94 = vsel %vm91, %v60, 0.0
    %v95 = vsel %vm91, %v61, 0.0
    %v96 = vsel %vm91, %v62, 0.0
    %v97 = vsel %vm91, %v63, 0.0
    %v98 = vsel %vm91, %v64, 0.0
    %v99 = vsel %vm91, %v65, 0.0
    %v100 = vsel %vm91, %v66, 0.0
    %v101 = vsel %vm91, %v67, 0.0
    %v102 = vsel %vm91, %v68, 0.0
    %v103 = vsel %vm91, %v69, 0.0
    %v104 = vsel %vm91, %v70, 0.0
    %v105 = vsel %vm91, %v71, 0.0
    %v106 = vsel %vm91, %v72, 0.0
    %v107 = vsel %vm91, %v73, 0.0
    %v109 = vlaneseq
    %v110 = vshrl.u32 %v109, 7
    %v111 = vsub.s32 0, %v110
    %v112 = vrot.slane %v90, %v111
    %114 = vmatprep.subr.mxu0 0.0
    %115 = vmatpush1.msra.mxu0 %v89
    %116 = vmatprep.subr.mxu0 0.0
    %117 = vmatpush1.msra.mxu0 %v88
    %118 = vmatprep.subr.mxu0 0.0
    %119 = vmatpush1.msra.mxu0 %v87
    %120 = vmatprep.subr.mxu0 0.0
    %121 = vmatpush1.msra.mxu0 %v86
    %122 = vmatprep.subr.mxu0 0.0
    %123 = vmatpush1.msra.mxu0 %v85
    %124 = vmatprep.subr.mxu0 0.0
    %125 = vmatpush1.msra.mxu0 %v84
    %126 = vmatprep.subr.mxu0 0.0
    %127 = vmatpush1.msra.mxu0 %v83
    %128 = vmatprep.subr.mxu0 0.0
    %129 = vmatpush1.msra.mxu0 %v82
    %130 = vmatprep.subr.mxu0 0.0
    %131 = vmatpush1.msra.mxu0 %v81
    %132 = vmatprep.subr.mxu0 0.0
    %133 = vmatpush1.msra.mxu0 %v80
    %134 = vmatprep.subr.mxu0 0.0
    %135 = vmatpush1.msra.mxu0 %v79
    %136 = vmatprep.subr.mxu0 0.0
    %137 = vmatpush1.msra.mxu0 %v78
    %138 = vmatprep.subr.mxu0 0.0
    %139 = vmatpush1.msra.mxu0 %v77
    %140 = vmatprep.subr.mxu0 0.0
    %141 = vmatpush1.msra.mxu0 %v76
    %142 = vmatprep.subr.mxu0 0.0
    %143 = vmatpush1.msra.mxu0 %v75
    %144 = vmatprep.subr.mxu0 0.0
    %145 = vmatpush1.msra.mxu0 %v74
    %146 = vmatprep.subr.mxu0 0.0
    %147 = vmatpush2.msra.mxu0 0.0
    %148 = vmatprep.subr.mxu0 0.0
    %149 = vmatpush2.msra.mxu0 0.0
    %150 = vmatprep.subr.mxu0 0.0
    %151 = vmatpush2.msra.mxu0 0.0
    %152 = vmatprep.subr.mxu0 0.0
    %153 = vmatpush2.msra.mxu0 0.0
    %154 = vmatprep.subr.mxu0 0.0
    %155 = vmatpush2.msra.mxu0 0.0
    %156 = vmatprep.subr.mxu0 0.0
    %157 = vmatpush2.msra.mxu0 0.0
    %158 = vmatprep.subr.mxu0 0.0
    %159 = vmatpush2.msra.mxu0 0.0
    %160 = vmatprep.subr.mxu0 0.0
    %161 = vmatpush2.msra.mxu0 0.0
    %162 = vmatprep.subr.mxu0 0.0
    %163 = vmatpush2.msra.mxu0 0.0
    %164 = vmatprep.subr.mxu0 0.0
    %165 = vmatpush2.msra.mxu0 0.0
    %166 = vmatprep.subr.mxu0 0.0
    %167 = vmatpush2.msra.mxu0 0.0
    %168 = vmatprep.subr.mxu0 0.0
    %169 = vmatpush2.msra.mxu0 0.0
    %170 = vmatprep.subr.mxu0 0.0
    %171 = vmatpush2.msra.mxu0 0.0
    %172 = vmatprep.subr.mxu0 0.0
    %173 = vmatpush2.msra.mxu0 0.0
    %174 = vmatprep.subr.mxu0 0.0
    %175 = vmatpush2.msra.mxu0 0.0
    %176 = vmatprep.subr.mxu0 0.0
    %177 = vmatpush2.msra.mxu0 0.0
    %178 = vmatprep.mubr.f32.mxu0 0.0
    %179 = vmatmul.mubr.f32.gmra.mxu0 %v92
    %v180 = vpop.f32.mrf.mxu0
    %v181 = vadd.f32 %v112, %v180
    %v182 = vpop.f32.mrf.mxu0
    %183 = vmatprep.mubr.f32.mxu0 0.0
    %184 = vmatmul.mubr.f32.gmra.mxu0 %v93
    %v185 = vpop.f32.mrf.mxu0
    %v186 = vadd.f32 %v112, %v185
    %v187 = vpop.f32.mrf.mxu0
    %188 = vmatprep.mubr.f32.mxu0 0.0
    %189 = vmatmul.mubr.f32.gmra.mxu0 %v94
    %v190 = vpop.f32.mrf.mxu0
    %v191 = vadd.f32 %v112, %v190
    %v192 = vpop.f32.mrf.mxu0
    %193 = vmatprep.mubr.f32.mxu0 0.0
    %194 = vmatmul.mubr.f32.gmra.mxu0 %v95
    %v195 = vpop.f32.mrf.mxu0
    %v196 = vadd.f32 %v112, %v195
    %v197 = vpop.f32.mrf.mxu0
    %198 = vmatprep.mubr.f32.mxu0 0.0
    %199 = vmatmul.mubr.f32.gmra.mxu0 %v96
    %v200 = vpop.f32.mrf.mxu0
    %v201 = vadd.f32 %v112, %v200
    %v202 = vpop.f32.mrf.mxu0
    %203 = vmatprep.mubr.f32.mxu0 0.0
    %204 = vmatmul.mubr.f32.gmra.mxu0 %v97
    %v205 = vpop.f32.mrf.mxu0
    %v206 = vadd.f32 %v112, %v205
    %v207 = vpop.f32.mrf.mxu0
    %208 = vmatprep.mubr.f32.mxu0 0.0
    %209 = vmatmul.mubr.f32.gmra.mxu0 %v98
    %v210 = vpop.f32.mrf.mxu0
    %v211 = vadd.f32 %v112, %v210
    %v212 = vpop.f32.mrf.mxu0
    %213 = vmatprep.mubr.f32.mxu0 0.0
    %214 = vmatmul.mubr.f32.gmra.mxu0 %v99
    %v215 = vpop.f32.mrf.mxu0
    %v216 = vadd.f32 %v112, %v215
    %v217 = vpop.f32.mrf.mxu0
    %218 = vmatprep.mubr.f32.mxu0 0.0
    %219 = vmatmul.mubr.f32.gmra.mxu0 %v100
    %v220 = vpop.f32.mrf.mxu0
    %v221 = vadd.f32 %v112, %v220
    %v222 = vpop.f32.mrf.mxu0
    %223 = vmatprep.mubr.f32.mxu0 0.0
    %224 = vmatmul.mubr.f32.gmra.mxu0 %v101
    %v225 = vpop.f32.mrf.mxu0
    %v226 = vadd.f32 %v112, %v225
    %v227 = vpop.f32.mrf.mxu0
    %228 = vmatprep.mubr.f32.mxu0 0.0
    %229 = vmatmul.mubr.f32.gmra.mxu0 %v102
    %v230 = vpop.f32.mrf.mxu0
    %v231 = vadd.f32 %v112, %v230
    %v232 = vpop.f32.mrf.mxu0
    %233 = vmatprep.mubr.f32.mxu0 0.0
    %234 = vmatmul.mubr.f32.gmra.mxu0 %v103
    %v235 = vpop.f32.mrf.mxu0
    %v236 = vadd.f32 %v112, %v235
    %v237 = vpop.f32.mrf.mxu0
    %238 = vmatprep.mubr.f32.mxu0 0.0
    %239 = vmatmul.mubr.f32.gmra.mxu0 %v104
    %v240 = vpop.f32.mrf.mxu0
    %v241 = vadd.f32 %v112, %v240
    %v242 = vpop.f32.mrf.mxu0
    %243 = vmatprep.mubr.f32.mxu0 0.0
    %244 = vmatmul.mubr.f32.gmra.mxu0 %v105
    %v245 = vpop.f32.mrf.mxu0
    %v246 = vadd.f32 %v112, %v245
    %v247 = vpop.f32.mrf.mxu0
    %248 = vmatprep.mubr.f32.mxu0 0.0
    %249 = vmatmul.mubr.f32.gmra.mxu0 %v106
    %v250 = vpop.f32.mrf.mxu0
    %v251 = vadd.f32 %v112, %v250
    %v252 = vpop.f32.mrf.mxu0
    %253 = vmatprep.mubr.f32.mxu0 0.0
    %254 = vmatmul.mubr.f32.gmra.mxu0 %v107
    %v255 = vpop.f32.mrf.mxu0
    %v256 = vadd.f32 %v112, %v255
    %v257 = vpop.f32.mrf.mxu0
    %258 = vdwg.mxu0
    %v259 = vmax.f32 %v181, 0.0
    %v260 = vmax.f32 %v186, 0.0
    %v261 = vmax.f32 %v191, 0.0
    %v262 = vmax.f32 %v196, 0.0
    %v263 = vmax.f32 %v201, 0.0
    %v264 = vmax.f32 %v206, 0.0
    %v265 = vmax.f32 %v211, 0.0
    %v266 = vmax.f32 %v216, 0.0
    %v267 = vmax.f32 %v221, 0.0
    %v268 = vmax.f32 %v226, 0.0
    %v269 = vmax.f32 %v231, 0.0
    %v270 = vmax.f32 %v236, 0.0
    %v271 = vmax.f32 %v241, 0.0
    %v272 = vmax.f32 %v246, 0.0
    %v273 = vmax.f32 %v251, 0.0
    %v274 = vmax.f32 %v256, 0.0
    %v275 = vld [vmem:[#allocation2] sm:$0xff]
    %v276 = vld [vmem:[#allocation2 + $0x8] sm:$0xff]
    %v277 = vld [vmem:[#allocation2 + $0x10] sm:$0xff]
    %v278 = vld [vmem:[#allocation2 + $0x18] sm:$0xff]
    %v279 = vld [vmem:[#allocation2 + $0x20] sm:$0xff]
    %v280 = vld [vmem:[#allocation2 + $0x28] sm:$0xff]
    %v281 = vld [vmem:[#allocation2 + $0x30] sm:$0xff]
    %v282 = vld [vmem:[#allocation2 + $0x38] sm:$0xff]
    %v283 = vld [vmem:[#allocation2 + $0x40] sm:$0xff]
    %v284 = vld [vmem:[#allocation2 + $0x48] sm:$0xff]
    %v285 = vld [vmem:[#allocation2 + $0x50] sm:$0xff]
    %v286 = vld [vmem:[#allocation2 + $0x58] sm:$0xff]
    %v287 = vld [vmem:[#allocation2 + $0x60] sm:$0xff]
    %v288 = vld [vmem:[#allocation2 + $0x68] sm:$0xff]
    %v289 = vld [vmem:[#allocation2 + $0x70] sm:$0xff]
    %v290 = vld [vmem:[#allocation2 + $0x78] sm:$0xff]
    %v291 = vld [vmem:[%s4] sm:$0x1]
    %v293 = vlaneseq
    %v294 = vshrl.u32 %v293, 7
    %v295 = vsub.s32 0, %v294
    %v296 = vrot.slane %v291, %v295
    %298 = vmatprep.subr.mxu0 0.0
    %299 = vmatpush1.msra.mxu0 %v290
    %300 = vmatprep.subr.mxu0 0.0
    %301 = vmatpush1.msra.mxu0 %v289
    %302 = vmatprep.subr.mxu0 0.0
    %303 = vmatpush1.msra.mxu0 %v288
    %304 = vmatprep.subr.mxu0 0.0
    %305 = vmatpush1.msra.mxu0 %v287
    %306 = vmatprep.subr.mxu0 0.0
    %307 = vmatpush1.msra.mxu0 %v286
    %308 = vmatprep.subr.mxu0 0.0
    %309 = vmatpush1.msra.mxu0 %v285
    %310 = vmatprep.subr.mxu0 0.0
    %311 = vmatpush1.msra.mxu0 %v284
    %312 = vmatprep.subr.mxu0 0.0
    %313 = vmatpush1.msra.mxu0 %v283
    %314 = vmatprep.subr.mxu0 0.0
    %315 = vmatpush1.msra.mxu0 %v282
    %316 = vmatprep.subr.mxu0 0.0
    %317 = vmatpush1.msra.mxu0 %v281
    %318 = vmatprep.subr.mxu0 0.0
    %319 = vmatpush1.msra.mxu0 %v280
    %320 = vmatprep.subr.mxu0 0.0
    %321 = vmatpush1.msra.mxu0 %v279
    %322 = vmatprep.subr.mxu0 0.0
    %323 = vmatpush1.msra.mxu0 %v278
    %324 = vmatprep.subr.mxu0 0.0
    %325 = vmatpush1.msra.mxu0 %v277
    %326 = vmatprep.subr.mxu0 0.0
    %327 = vmatpush1.msra.mxu0 %v276
    %328 = vmatprep.subr.mxu0 0.0
    %329 = vmatpush1.msra.mxu0 %v275
    %330 = vmatprep.subr.mxu0 0.0
    %331 = vmatpush2.msra.mxu0 0.0
    %332 = vmatprep.subr.mxu0 0.0
    %333 = vmatpush2.msra.mxu0 0.0
    %334 = vmatprep.subr.mxu0 0.0
    %335 = vmatpush2.msra.mxu0 0.0
    %336 = vmatprep.subr.mxu0 0.0
    %337 = vmatpush2.msra.mxu0 0.0
    %338 = vmatprep.subr.mxu0 0.0
    %339 = vmatpush2.msra.mxu0 0.0
    %340 = vmatprep.subr.mxu0 0.0
    %341 = vmatpush2.msra.mxu0 0.0
    %342 = vmatprep.subr.mxu0 0.0
    %343 = vmatpush2.msra.mxu0 0.0
    %344 = vmatprep.subr.mxu0 0.0
    %345 = vmatpush2.msra.mxu0 0.0
    %346 = vmatprep.subr.mxu0 0.0
    %347 = vmatpush2.msra.mxu0 0.0
    %348 = vmatprep.subr.mxu0 0.0
    %349 = vmatpush2.msra.mxu0 0.0
    %350 = vmatprep.subr.mxu0 0.0
    %351 = vmatpush2.msra.mxu0 0.0
    %352 = vmatprep.subr.mxu0 0.0
    %353 = vmatpush2.msra.mxu0 0.0
    %354 = vmatprep.subr.mxu0 0.0
    %355 = vmatpush2.msra.mxu0 0.0
    %356 = vmatprep.subr.mxu0 0.0
    %357 = vmatpush2.msra.mxu0 0.0
    %358 = vmatprep.subr.mxu0 0.0
    %359 = vmatpush2.msra.mxu0 0.0
    %360 = vmatprep.subr.mxu0 0.0
    %361 = vmatpush2.msra.mxu0 0.0
    %362 = vmatprep.mubr.f32.mxu0 0.0
    %363 = vmatmul.mubr.f32.gmra.mxu0 %v259
    %v364 = vpop.f32.mrf.mxu0
    %v365 = vadd.f32 %v296, %v364
    %v366 = vpop.f32.mrf.mxu0
    %367 = vmatprep.mubr.f32.mxu0 0.0
    %368 = vmatmul.mubr.f32.gmra.mxu0 %v260
    %v369 = vpop.f32.mrf.mxu0
    %v370 = vadd.f32 %v296, %v369
    %v371 = vpop.f32.mrf.mxu0
    %372 = vmatprep.mubr.f32.mxu0 0.0
    %373 = vmatmul.mubr.f32.gmra.mxu0 %v261
    %v374 = vpop.f32.mrf.mxu0
    %v375 = vadd.f32 %v296, %v374
    %v376 = vpop.f32.mrf.mxu0
    %377 = vmatprep.mubr.f32.mxu0 0.0
    %378 = vmatmul.mubr.f32.gmra.mxu0 %v262
    %v379 = vpop.f32.mrf.mxu0
    %v380 = vadd.f32 %v296, %v379
    %v381 = vpop.f32.mrf.mxu0
    %382 = vmatprep.mubr.f32.mxu0 0.0
    %383 = vmatmul.mubr.f32.gmra.mxu0 %v263
    %v384 = vpop.f32.mrf.mxu0
    %v385 = vadd.f32 %v296, %v384
    %v386 = vpop.f32.mrf.mxu0
    %387 = vmatprep.mubr.f32.mxu0 0.0
    %388 = vmatmul.mubr.f32.gmra.mxu0 %v264
    %v389 = vpop.f32.mrf.mxu0
    %v390 = vadd.f32 %v296, %v389
    %v391 = vpop.f32.mrf.mxu0
    %392 = vmatprep.mubr.f32.mxu0 0.0
    %393 = vmatmul.mubr.f32.gmra.mxu0 %v265
    %v394 = vpop.f32.mrf.mxu0
    %v395 = vadd.f32 %v296, %v394
    %v396 = vpop.f32.mrf.mxu0
    %397 = vmatprep.mubr.f32.mxu0 0.0
    %398 = vmatmul.mubr.f32.gmra.mxu0 %v266
    %v399 = vpop.f32.mrf.mxu0
    %v400 = vadd.f32 %v296, %v399
    %v401 = vpop.f32.mrf.mxu0
    %402 = vmatprep.mubr.f32.mxu0 0.0
    %403 = vmatmul.mubr.f32.gmra.mxu0 %v267
    %v404 = vpop.f32.mrf.mxu0
    %v405 = vadd.f32 %v296, %v404
    %v406 = vpop.f32.mrf.mxu0
    %407 = vmatprep.mubr.f32.mxu0 0.0
    %408 = vmatmul.mubr.f32.gmra.mxu0 %v268
    %v409 = vpop.f32.mrf.mxu0
    %v410 = vadd.f32 %v296, %v409
    %v411 = vpop.f32.mrf.mxu0
    %412 = vmatprep.mubr.f32.mxu0 0.0
    %413 = vmatmul.mubr.f32.gmra.mxu0 %v269
    %v414 = vpop.f32.mrf.mxu0
    %v415 = vadd.f32 %v296, %v414
    %v416 = vpop.f32.mrf.mxu0
    %417 = vmatprep.mubr.f32.mxu0 0.0
    %418 = vmatmul.mubr.f32.gmra.mxu0 %v270
    %v419 = vpop.f32.mrf.mxu0
    %v420 = vadd.f32 %v296, %v419
    %v421 = vpop.f32.mrf.mxu0
    %422 = vmatprep.mubr.f32.mxu0 0.0
    %423 = vmatmul.mubr.f32.gmra.mxu0 %v271
    %v424 = vpop.f32.mrf.mxu0
    %v425 = vadd.f32 %v296, %v424
    %v426 = vpop.f32.mrf.mxu0
    %427 = vmatprep.mubr.f32.mxu0 0.0
    %428 = vmatmul.mubr.f32.gmra.mxu0 %v272
    %v429 = vpop.f32.mrf.mxu0
    %v430 = vadd.f32 %v296, %v429
    %v431 = vpop.f32.mrf.mxu0
    %432 = vmatprep.mubr.f32.mxu0 0.0
    %433 = vmatmul.mubr.f32.gmra.mxu0 %v273
    %v434 = vpop.f32.mrf.mxu0
    %v435 = vadd.f32 %v296, %v434
    %v436 = vpop.f32.mrf.mxu0
    %437 = vmatprep.mubr.f32.mxu0 0.0
    %438 = vmatmul.mubr.f32.gmra.mxu0 %v274
    %v439 = vpop.f32.mrf.mxu0
    %v440 = vadd.f32 %v296, %v439
    %v441 = vpop.f32.mrf.mxu0
    %442 = vdwg.mxu0
    %v443 = vmax.f32 %v365, 0.0
    %v444 = vmax.f32 %v370, 0.0
    %v445 = vmax.f32 %v375, 0.0
    %v446 = vmax.f32 %v380, 0.0
    %v447 = vmax.f32 %v385, 0.0
    %v448 = vmax.f32 %v390, 0.0
    %v449 = vmax.f32 %v395, 0.0
    %v450 = vmax.f32 %v400, 0.0
    %v451 = vmax.f32 %v405, 0.0
    %v452 = vmax.f32 %v410, 0.0
    %v453 = vmax.f32 %v415, 0.0
    %v454 = vmax.f32 %v420, 0.0
    %v455 = vmax.f32 %v425, 0.0
    %v456 = vmax.f32 %v430, 0.0
    %v457 = vmax.f32 %v435, 0.0
    %v458 = vmax.f32 %v440, 0.0
    %v459 = vld [vmem:[#allocation5] sm:$0xff]
    %v460 = vld [vmem:[#allocation5 + $0x8] sm:$0xff]
    %v461 = vld [vmem:[#allocation5 + $0x10] sm:$0xff]
    %v462 = vld [vmem:[#allocation5 + $0x18] sm:$0xff]
    %v463 = vld [vmem:[#allocation5 + $0x20] sm:$0xff]
    %v464 = vld [vmem:[#allocation5 + $0x28] sm:$0xff]
    %v465 = vld [vmem:[#allocation5 + $0x30] sm:$0xff]
    %v466 = vld [vmem:[#allocation5 + $0x38] sm:$0xff]
    %v467 = vld [vmem:[#allocation5 + $0x40] sm:$0xff]
    %v468 = vld [vmem:[#allocation5 + $0x48] sm:$0xff]
    %v469 = vld [vmem:[#allocation5 + $0x50] sm:$0xff]
    %v470 = vld [vmem:[#allocation5 + $0x58] sm:$0xff]
    %v471 = vld [vmem:[#allocation5 + $0x60] sm:$0xff]
    %v472 = vld [vmem:[#allocation5 + $0x68] sm:$0xff]
    %v473 = vld [vmem:[#allocation5 + $0x70] sm:$0xff]
    %v474 = vld [vmem:[#allocation5 + $0x78] sm:$0xff]
    %v475 = vld [vmem:[%s6] sm:$0x1]
    %v477 = vlaneseq
    %v478 = vshrl.u32 %v477, 7
    %v479 = vsub.s32 0, %v478
    %v480 = vrot.slane %v475, %v479
    %482 = vmatprep.subr.mxu0 0.0
    %483 = vmatpush1.msra.mxu0 %v474
    %484 = vmatprep.subr.mxu0 0.0
    %485 = vmatpush1.msra.mxu0 %v473
    %486 = vmatprep.subr.mxu0 0.0
    %487 = vmatpush1.msra.mxu0 %v472
    %488 = vmatprep.subr.mxu0 0.0
    %489 = vmatpush1.msra.mxu0 %v471
    %490 = vmatprep.subr.mxu0 0.0
    %491 = vmatpush1.msra.mxu0 %v470
    %492 = vmatprep.subr.mxu0 0.0
    %493 = vmatpush1.msra.mxu0 %v469
    %494 = vmatprep.subr.mxu0 0.0
    %495 = vmatpush1.msra.mxu0 %v468
    %496 = vmatprep.subr.mxu0 0.0
    %497 = vmatpush1.msra.mxu0 %v467
    %498 = vmatprep.subr.mxu0 0.0
    %499 = vmatpush1.msra.mxu0 %v466
    %500 = vmatprep.subr.mxu0 0.0
    %501 = vmatpush1.msra.mxu0 %v465
    %502 = vmatprep.subr.mxu0 0.0
    %503 = vmatpush1.msra.mxu0 %v464
    %504 = vmatprep.subr.mxu0 0.0
    %505 = vmatpush1.msra.mxu0 %v463
    %506 = vmatprep.subr.mxu0 0.0
    %507 = vmatpush1.msra.mxu0 %v462
    %508 = vmatprep.subr.mxu0 0.0
    %509 = vmatpush1.msra.mxu0 %v461
    %510 = vmatprep.subr.mxu0 0.0
    %511 = vmatpush1.msra.mxu0 %v460
    %512 = vmatprep.subr.mxu0 0.0
    %513 = vmatpush1.msra.mxu0 %v459
    %514 = vmatprep.subr.mxu0 0.0
    %515 = vmatpush2.msra.mxu0 0.0
    %516 = vmatprep.subr.mxu0 0.0
    %517 = vmatpush2.msra.mxu0 0.0
    %518 = vmatprep.subr.mxu0 0.0
    %519 = vmatpush2.msra.mxu0 0.0
    %520 = vmatprep.subr.mxu0 0.0
    %521 = vmatpush2.msra.mxu0 0.0
    %522 = vmatprep.subr.mxu0 0.0
    %523 = vmatpush2.msra.mxu0 0.0
    %524 = vmatprep.subr.mxu0 0.0
    %525 = vmatpush2.msra.mxu0 0.0
    %526 = vmatprep.subr.mxu0 0.0
    %527 = vmatpush2.msra.mxu0 0.0
    %528 = vmatprep.subr.mxu0 0.0
    %529 = vmatpush2.msra.mxu0 0.0
    %530 = vmatprep.subr.mxu0 0.0
    %531 = vmatpush2.msra.mxu0 0.0
    %532 = vmatprep.subr.mxu0 0.0
    %533 = vmatpush2.msra.mxu0 0.0
    %534 = vmatprep.subr.mxu0 0.0
    %535 = vmatpush2.msra.mxu0 0.0
    %536 = vmatprep.subr.mxu0 0.0
    %537 = vmatpush2.msra.mxu0 0.0
    %538 = vmatprep.subr.mxu0 0.0
    %539 = vmatpush2.msra.mxu0 0.0
    %540 = vmatprep.subr.mxu0 0.0
    %541 = vmatpush2.msra.mxu0 0.0
    %542 = vmatprep.subr.mxu0 0.0
    %543 = vmatpush2.msra.mxu0 0.0
    %544 = vmatprep.subr.mxu0 0.0
    %545 = vmatpush2.msra.mxu0 0.0
    %546 = vmatprep.mubr.f32.mxu0 0.0
    %547 = vmatmul.mubr.f32.gmra.mxu0 %v443
    %v548 = vpop.f32.mrf.mxu0
    %v549 = vadd.f32 %v480, %v548
    %v550 = vpop.f32.mrf.mxu0
    %551 = vmatprep.mubr.f32.mxu0 0.0
    %552 = vmatmul.mubr.f32.gmra.mxu0 %v444
    %v553 = vpop.f32.mrf.mxu0
    %v554 = vadd.f32 %v480, %v553
    %v555 = vpop.f32.mrf.mxu0
    %556 = vmatprep.mubr.f32.mxu0 0.0
    %557 = vmatmul.mubr.f32.gmra.mxu0 %v445
    %v558 = vpop.f32.mrf.mxu0
    %v559 = vadd.f32 %v480, %v558
    %v560 = vpop.f32.mrf.mxu0
    %561 = vmatprep.mubr.f32.mxu0 0.0
    %562 = vmatmul.mubr.f32.gmra.mxu0 %v446
    %v563 = vpop.f32.mrf.mxu0
    %v564 = vadd.f32 %v480, %v563
    %v565 = vpop.f32.mrf.mxu0
    %566 = vmatprep.mubr.f32.mxu0 0.0
    %567 = vmatmul.mubr.f32.gmra.mxu0 %v447
    %v568 = vpop.f32.mrf.mxu0
    %v569 = vadd.f32 %v480, %v568
    %v570 = vpop.f32.mrf.mxu0
    %571 = vmatprep.mubr.f32.mxu0 0.0
    %572 = vmatmul.mubr.f32.gmra.mxu0 %v448
    %v573 = vpop.f32.mrf.mxu0
    %v574 = vadd.f32 %v480, %v573
    %v575 = vpop.f32.mrf.mxu0
    %576 = vmatprep.mubr.f32.mxu0 0.0
    %577 = vmatmul.mubr.f32.gmra.mxu0 %v449
    %v578 = vpop.f32.mrf.mxu0
    %v579 = vadd.f32 %v480, %v578
    %v580 = vpop.f32.mrf.mxu0
    %581 = vmatprep.mubr.f32.mxu0 0.0
    %582 = vmatmul.mubr.f32.gmra.mxu0 %v450
    %v583 = vpop.f32.mrf.mxu0
    %v584 = vadd.f32 %v480, %v583
    %v585 = vpop.f32.mrf.mxu0
    %586 = vmatprep.mubr.f32.mxu0 0.0
    %587 = vmatmul.mubr.f32.gmra.mxu0 %v451
    %v588 = vpop.f32.mrf.mxu0
    %v589 = vadd.f32 %v480, %v588
    %v590 = vpop.f32.mrf.mxu0
    %591 = vmatprep.mubr.f32.mxu0 0.0
    %592 = vmatmul.mubr.f32.gmra.mxu0 %v452
    %v593 = vpop.f32.mrf.mxu0
    %v594 = vadd.f32 %v480, %v593
    %v595 = vpop.f32.mrf.mxu0
    %596 = vmatprep.mubr.f32.mxu0 0.0
    %597 = vmatmul.mubr.f32.gmra.mxu0 %v453
    %v598 = vpop.f32.mrf.mxu0
    %v599 = vadd.f32 %v480, %v598
    %v600 = vpop.f32.mrf.mxu0
    %601 = vmatprep.mubr.f32.mxu0 0.0
    %602 = vmatmul.mubr.f32.gmra.mxu0 %v454
    %v603 = vpop.f32.mrf.mxu0
    %v604 = vadd.f32 %v480, %v603
    %v605 = vpop.f32.mrf.mxu0
    %606 = vmatprep.mubr.f32.mxu0 0.0
    %607 = vmatmul.mubr.f32.gmra.mxu0 %v455
    %v608 = vpop.f32.mrf.mxu0
    %v609 = vadd.f32 %v480, %v608
    %v610 = vpop.f32.mrf.mxu0
    %611 = vmatprep.mubr.f32.mxu0 0.0
    %612 = vmatmul.mubr.f32.gmra.mxu0 %v456
    %v613 = vpop.f32.mrf.mxu0
    %v614 = vadd.f32 %v480, %v613
    %v615 = vpop.f32.mrf.mxu0
    %616 = vmatprep.mubr.f32.mxu0 0.0
    %617 = vmatmul.mubr.f32.gmra.mxu0 %v457
    %v618 = vpop.f32.mrf.mxu0
    %v619 = vadd.f32 %v480, %v618
    %v620 = vpop.f32.mrf.mxu0
    %621 = vmatprep.mubr.f32.mxu0 0.0
    %622 = vmatmul.mubr.f32.gmra.mxu0 %v458
    %v623 = vpop.f32.mrf.mxu0
    %v624 = vadd.f32 %v480, %v623
    %v625 = vpop.f32.mrf.mxu0
    %626 = vdwg.mxu0
    %v627 = vtanh.pop %v549
    %v628 = vtanh.pop %v554
    %v629 = vtanh.pop %v559
    %v630 = vtanh.pop %v564
    %v631 = vtanh.pop %v569
    %v632 = vtanh.pop %v574
    %v633 = vtanh.pop %v579
    %v634 = vtanh.pop %v584
    %v635 = vtanh.pop %v589
    %v636 = vtanh.pop %v594
    %v637 = vtanh.pop %v599
    %v638 = vtanh.pop %v604
    %v639 = vtanh.pop %v609
    %v640 = vtanh.pop %v614
    %v641 = vtanh.pop %v619
    %v642 = vtanh.pop %v624
    %v643 = vlaneseq
    %v644 = vand.u32 %v643, 127
    %vm645 = vcmp.lt.s32.totalorder %v644, 4
    %v646 = vsel %vm645, %v627, -3.4e+38
    %v647 = vsel %vm645, %v628, -3.4e+38
    %v648 = vsel %vm645, %v629, -3.4e+38
    %v649 = vsel %vm645, %v630, -3.4e+38
    %v650 = vsel %vm645, %v631, -3.4e+38
    %v651 = vsel %vm645, %v632, -3.4e+38
    %v652 = vsel %vm645, %v633, -3.4e+38
    %v653 = vsel %vm645, %v634, -3.4e+38
    %v654 = vsel %vm645, %v635, -3.4e+38
    %v655 = vsel %vm645, %v636, -3.4e+38
    %v656 = vsel %vm645, %v637, -3.4e+38
    %v657 = vsel %vm645, %v638, -3.4e+38
    %v658 = vsel %vm645, %v639, -3.4e+38
    %v659 = vsel %vm645, %v640, -3.4e+38
    %v660 = vsel %vm645, %v641, -3.4e+38
    %v661 = vsel %vm645, %v642, -3.4e+38
    %662 = vmax.xlane.f32.xlu0 %v646
    %v663 = vpop.xlane.xlu0 %662
    %664 = vmax.xlane.f32.xlu0 %v647
    %v665 = vpop.xlane.xlu0 %664
    %666 = vmax.xlane.f32.xlu0 %v648
    %v667 = vpop.xlane.xlu0 %666
    %668 = vmax.xlane.f32.xlu0 %v649
    %v669 = vpop.xlane.xlu0 %668
    %670 = vmax.xlane.f32.xlu0 %v650
    %v671 = vpop.xlane.xlu0 %670
    %672 = vmax.xlane.f32.xlu0 %v651
    %v673 = vpop.xlane.xlu0 %672
    %674 = vmax.xlane.f32.xlu0 %v652
    %v675 = vpop.xlane.xlu0 %674
    %676 = vmax.xlane.f32.xlu0 %v653
    %v677 = vpop.xlane.xlu0 %676
    %678 = vmax.xlane.f32.xlu0 %v654
    %v679 = vpop.xlane.xlu0 %678
    %680 = vmax.xlane.f32.xlu0 %v655
    %v681 = vpop.xlane.xlu0 %680
    %682 = vmax.xlane.f32.xlu0 %v656
    %v683 = vpop.xlane.xlu0 %682
    %684 = vmax.xlane.f32.xlu0 %v657
    %v685 = vpop.xlane.xlu0 %684
    %686 = vmax.xlane.f32.xlu0 %v658
    %v687 = vpop.xlane.xlu0 %686
    %688 = vmax.xlane.f32.xlu0 %v659
    %v689 = vpop.xlane.xlu0 %688
    %690 = vmax.xlane.f32.xlu0 %v660
    %v691 = vpop.xlane.xlu0 %690
    %692 = vmax.xlane.f32.xlu0 %v661
    %v693 = vpop.xlane.xlu0 %692
    %vm694 = vcmp.eq.f32.partialorder %v646, %v663
    %vm695 = vcmp.eq.f32.partialorder %v647, %v665
    %vm696 = vcmp.eq.f32.partialorder %v648, %v667
    %vm697 = vcmp.eq.f32.partialorder %v649, %v669
    %vm698 = vcmp.eq.f32.partialorder %v650, %v671
    %vm699 = vcmp.eq.f32.partialorder %v651, %v673
    %vm700 = vcmp.eq.f32.partialorder %v652, %v675
    %vm701 = vcmp.eq.f32.partialorder %v653, %v677
    %vm702 = vcmp.eq.f32.partialorder %v654, %v679
    %vm703 = vcmp.eq.f32.partialorder %v655, %v681
    %vm704 = vcmp.eq.f32.partialorder %v656, %v683
    %vm705 = vcmp.eq.f32.partialorder %v657, %v685
    %vm706 = vcmp.eq.f32.partialorder %v658, %v687
    %vm707 = vcmp.eq.f32.partialorder %v659, %v689
    %vm708 = vcmp.eq.f32.partialorder %v660, %v691
    %vm709 = vcmp.eq.f32.partialorder %v661, %v693
    %v710 = vsel %vm694, %v644, 128
    %v711 = vsel %vm695, %v644, 128
    %v712 = vsel %vm696, %v644, 128
    %v713 = vsel %vm697, %v644, 128
    %v714 = vsel %vm698, %v644, 128
    %v715 = vsel %vm699, %v644, 128
    %v716 = vsel %vm700, %v644, 128
    %v717 = vsel %vm701, %v644, 128
    %v718 = vsel %vm702, %v644, 128
    %v719 = vsel %vm703, %v644, 128
    %v720 = vsel %vm704, %v644, 128
    %v721 = vsel %vm705, %v644, 128
    %v722 = vsel %vm706, %v644, 128
    %v723 = vsel %vm707, %v644, 128
    %v724 = vsel %vm708, %v644, 128
    %v725 = vsel %vm709, %v644, 128
    %v726 = vand.u32 %v710, 65535
    %v727 = vshra.s32 %v710, 16
    %v728 = vcvt.s32.f32 %v726
    %v729 = vcvt.s32.f32 %v727
    %730 = vmin.xlane.f32.xlu0 %v729
    %v731 = vpop.xlane.xlu0 %730
    %vm732 = vcmp.eq.f32.partialorder %v729, %v731
    %v733 = vsel %vm732, %v728, inf
    %734 = vmin.xlane.f32.xlu0 %v733
    %v735 = vpop.xlane.xlu0 %734
    %v736 = vcvt.f32.s32 %v735
    %v737 = vcvt.f32.s32 %v731
    %v738 = vshll.u32 %v737, 16
    %v739 = vadd.s32 %v738, %v736
    %v740 = vand.u32 %v711, 65535
    %v741 = vshra.s32 %v711, 16
    %v742 = vcvt.s32.f32 %v740
    %v743 = vcvt.s32.f32 %v741
    %744 = vmin.xlane.f32.xlu0 %v743
    %v745 = vpop.xlane.xlu0 %744
    %vm746 = vcmp.eq.f32.partialorder %v743, %v745
    %v747 = vsel %vm746, %v742, inf
    %748 = vmin.xlane.f32.xlu0 %v747
    %v749 = vpop.xlane.xlu0 %748
    %v750 = vcvt.f32.s32 %v749
    %v751 = vcvt.f32.s32 %v745
    %v752 = vshll.u32 %v751, 16
    %v753 = vadd.s32 %v752, %v750
    %v754 = vand.u32 %v712, 65535
    %v755 = vshra.s32 %v712, 16
    %v756 = vcvt.s32.f32 %v754
    %v757 = vcvt.s32.f32 %v755
    %758 = vmin.xlane.f32.xlu0 %v757
    %v759 = vpop.xlane.xlu0 %758
    %vm760 = vcmp.eq.f32.partialorder %v757, %v759
    %v761 = vsel %vm760, %v756, inf
    %762 = vmin.xlane.f32.xlu0 %v761
    %v763 = vpop.xlane.xlu0 %762
    %v764 = vcvt.f32.s32 %v763
    %v765 = vcvt.f32.s32 %v759
    %v766 = vshll.u32 %v765, 16
    %v767 = vadd.s32 %v766, %v764
    %v768 = vand.u32 %v713, 65535
    %v769 = vshra.s32 %v713, 16
    %v770 = vcvt.s32.f32 %v768
    %v771 = vcvt.s32.f32 %v769
    %772 = vmin.xlane.f32.xlu0 %v771
    %v773 = vpop.xlane.xlu0 %772
    %vm774 = vcmp.eq.f32.partialorder %v771, %v773
    %v775 = vsel %vm774, %v770, inf
    %776 = vmin.xlane.f32.xlu0 %v775
    %v777 = vpop.xlane.xlu0 %776
    %v778 = vcvt.f32.s32 %v777
    %v779 = vcvt.f32.s32 %v773
    %v780 = vshll.u32 %v779, 16
    %v781 = vadd.s32 %v780, %v778
    %v782 = vand.u32 %v714, 65535
    %v783 = vshra.s32 %v714, 16
    %v784 = vcvt.s32.f32 %v782
    %v785 = vcvt.s32.f32 %v783
    %786 = vmin.xlane.f32.xlu0 %v785
    %v787 = vpop.xlane.xlu0 %786
    %vm788 = vcmp.eq.f32.partialorder %v785, %v787
    %v789 = vsel %vm788, %v784, inf
    %790 = vmin.xlane.f32.xlu0 %v789
    %v791 = vpop.xlane.xlu0 %790
    %v792 = vcvt.f32.s32 %v791
    %v793 = vcvt.f32.s32 %v787
    %v794 = vshll.u32 %v793, 16
    %v795 = vadd.s32 %v794, %v792
    %v796 = vand.u32 %v715, 65535
    %v797 = vshra.s32 %v715, 16
    %v798 = vcvt.s32.f32 %v796
    %v799 = vcvt.s32.f32 %v797
    %800 = vmin.xlane.f32.xlu0 %v799
    %v801 = vpop.xlane.xlu0 %800
    %vm802 = vcmp.eq.f32.partialorder %v799, %v801
    %v803 = vsel %vm802, %v798, inf
    %804 = vmin.xlane.f32.xlu0 %v803
    %v805 = vpop.xlane.xlu0 %804
    %v806 = vcvt.f32.s32 %v805
    %v807 = vcvt.f32.s32 %v801
    %v808 = vshll.u32 %v807, 16
    %v809 = vadd.s32 %v808, %v806
    %v810 = vand.u32 %v716, 65535
    %v811 = vshra.s32 %v716, 16
    %v812 = vcvt.s32.f32 %v810
    %v813 = vcvt.s32.f32 %v811
    %814 = vmin.xlane.f32.xlu0 %v813
    %v815 = vpop.xlane.xlu0 %814
    %vm816 = vcmp.eq.f32.partialorder %v813, %v815
    %v817 = vsel %vm816, %v812, inf
    %818 = vmin.xlane.f32.xlu0 %v817
    %v819 = vpop.xlane.xlu0 %818
    %v820 = vcvt.f32.s32 %v819
    %v821 = vcvt.f32.s32 %v815
    %v822 = vshll.u32 %v821, 16
    %v823 = vadd.s32 %v822, %v820
    %v824 = vand.u32 %v717, 65535
    %v825 = vshra.s32 %v717, 16
    %v826 = vcvt.s32.f32 %v824
    %v827 = vcvt.s32.f32 %v825
    %828 = vmin.xlane.f32.xlu0 %v827
    %v829 = vpop.xlane.xlu0 %828
    %vm830 = vcmp.eq.f32.partialorder %v827, %v829
    %v831 = vsel %vm830, %v826, inf
    %832 = vmin.xlane.f32.xlu0 %v831
    %v833 = vpop.xlane.xlu0 %832
    %v834 = vcvt.f32.s32 %v833
    %v835 = vcvt.f32.s32 %v829
    %v836 = vshll.u32 %v835, 16
    %v837 = vadd.s32 %v836, %v834
    %v838 = vand.u32 %v718, 65535
    %v839 = vshra.s32 %v718, 16
    %v840 = vcvt.s32.f32 %v838
    %v841 = vcvt.s32.f32 %v839
    %842 = vmin.xlane.f32.xlu0 %v841
    %v843 = vpop.xlane.xlu0 %842
    %vm844 = vcmp.eq.f32.partialorder %v841, %v843
    %v845 = vsel %vm844, %v840, inf
    %846 = vmin.xlane.f32.xlu0 %v845
    %v847 = vpop.xlane.xlu0 %846
    %v848 = vcvt.f32.s32 %v847
    %v849 = vcvt.f32.s32 %v843
    %v850 = vshll.u32 %v849, 16
    %v851 = vadd.s32 %v850, %v848
    %v852 = vand.u32 %v719, 65535
    %v853 = vshra.s32 %v719, 16
    %v854 = vcvt.s32.f32 %v852
    %v855 = vcvt.s32.f32 %v853
    %856 = vmin.xlane.f32.xlu0 %v855
    %v857 = vpop.xlane.xlu0 %856
    %vm858 = vcmp.eq.f32.partialorder %v855, %v857
    %v859 = vsel %vm858, %v854, inf
    %860 = vmin.xlane.f32.xlu0 %v859
    %v861 = vpop.xlane.xlu0 %860
    %v862 = vcvt.f32.s32 %v861
    %v863 = vcvt.f32.s32 %v857
    %v864 = vshll.u32 %v863, 16
    %v865 = vadd.s32 %v864, %v862
    %v866 = vand.u32 %v720, 65535
    %v867 = vshra.s32 %v720, 16
    %v868 = vcvt.s32.f32 %v866
    %v869 = vcvt.s32.f32 %v867
    %870 = vmin.xlane.f32.xlu0 %v869
    %v871 = vpop.xlane.xlu0 %870
    %vm872 = vcmp.eq.f32.partialorder %v869, %v871
    %v873 = vsel %vm872, %v868, inf
    %874 = vmin.xlane.f32.xlu0 %v873
    %v875 = vpop.xlane.xlu0 %874
    %v876 = vcvt.f32.s32 %v875
    %v877 = vcvt.f32.s32 %v871
    %v878 = vshll.u32 %v877, 16
    %v879 = vadd.s32 %v878, %v876
    %v880 = vand.u32 %v721, 65535
    %v881 = vshra.s32 %v721, 16
    %v882 = vcvt.s32.f32 %v880
    %v883 = vcvt.s32.f32 %v881
    %884 = vmin.xlane.f32.xlu0 %v883
    %v885 = vpop.xlane.xlu0 %884
    %vm886 = vcmp.eq.f32.partialorder %v883, %v885
    %v887 = vsel %vm886, %v882, inf
    %888 = vmin.xlane.f32.xlu0 %v887
    %v889 = vpop.xlane.xlu0 %888
    %v890 = vcvt.f32.s32 %v889
    %v891 = vcvt.f32.s32 %v885
    %v892 = vshll.u32 %v891, 16
    %v893 = vadd.s32 %v892, %v890
    %v894 = vand.u32 %v722, 65535
    %v895 = vshra.s32 %v722, 16
    %v896 = vcvt.s32.f32 %v894
    %v897 = vcvt.s32.f32 %v895
    %898 = vmin.xlane.f32.xlu0 %v897
    %v899 = vpop.xlane.xlu0 %898
    %vm900 = vcmp.eq.f32.partialorder %v897, %v899
    %v901 = vsel %vm900, %v896, inf
    %902 = vmin.xlane.f32.xlu0 %v901
    %v903 = vpop.xlane.xlu0 %902
    %v904 = vcvt.f32.s32 %v903
    %v905 = vcvt.f32.s32 %v899
    %v906 = vshll.u32 %v905, 16
    %v907 = vadd.s32 %v906, %v904
    %v908 = vand.u32 %v723, 65535
    %v909 = vshra.s32 %v723, 16
    %v910 = vcvt.s32.f32 %v908
    %v911 = vcvt.s32.f32 %v909
    %912 = vmin.xlane.f32.xlu0 %v911
    %v913 = vpop.xlane.xlu0 %912
    %vm914 = vcmp.eq.f32.partialorder %v911, %v913
    %v915 = vsel %vm914, %v910, inf
    %916 = vmin.xlane.f32.xlu0 %v915
    %v917 = vpop.xlane.xlu0 %916
    %v918 = vcvt.f32.s32 %v917
    %v919 = vcvt.f32.s32 %v913
    %v920 = vshll.u32 %v919, 16
    %v921 = vadd.s32 %v920, %v918
    %v922 = vand.u32 %v724, 65535
    %v923 = vshra.s32 %v724, 16
    %v924 = vcvt.s32.f32 %v922
    %v925 = vcvt.s32.f32 %v923
    %926 = vmin.xlane.f32.xlu0 %v925
    %v927 = vpop.xlane.xlu0 %926
    %vm928 = vcmp.eq.f32.partialorder %v925, %v927
    %v929 = vsel %vm928, %v924, inf
    %930 = vmin.xlane.f32.xlu0 %v929
    %v931 = vpop.xlane.xlu0 %930
    %v932 = vcvt.f32.s32 %v931
    %v933 = vcvt.f32.s32 %v927
    %v934 = vshll.u32 %v933, 16
    %v935 = vadd.s32 %v934, %v932
    %v936 = vand.u32 %v725, 65535
    %v937 = vshra.s32 %v725, 16
    %v938 = vcvt.s32.f32 %v936
    %v939 = vcvt.s32.f32 %v937
    %940 = vmin.xlane.f32.xlu0 %v939
    %v941 = vpop.xlane.xlu0 %940
    %vm942 = vcmp.eq.f32.partialorder %v939, %v941
    %v943 = vsel %vm942, %v938, inf
    %944 = vmin.xlane.f32.xlu0 %v943
    %v945 = vpop.xlane.xlu0 %944
    %v946 = vcvt.f32.s32 %v945
    %v947 = vcvt.f32.s32 %v941
    %v948 = vshll.u32 %v947, 16
    %v949 = vadd.s32 %v948, %v946
    %950 = vst [vmem:[#allocation7] sm:$0xff] %v627
    %951 = vst [vmem:[#allocation7 + $0x8] sm:$0xff] %v628
    %952 = vst [vmem:[#allocation7 + $0x10] sm:$0xff] %v629
    %953 = vst [vmem:[#allocation7 + $0x18] sm:$0xff] %v630
    %954 = vst [vmem:[#allocation7 + $0x20] sm:$0xff] %v631
    %955 = vst [vmem:[#allocation7 + $0x28] sm:$0xff] %v632
    %956 = vst [vmem:[#allocation7 + $0x30] sm:$0xff] %v633
    %957 = vst [vmem:[#allocation7 + $0x38] sm:$0xff] %v634
    %958 = vst [vmem:[#allocation7 + $0x40] sm:$0xff] %v635
    %959 = vst [vmem:[#allocation7 + $0x48] sm:$0xff] %v636
    %960 = vst [vmem:[#allocation7 + $0x50] sm:$0xff] %v637
    %961 = vst [vmem:[#allocation7 + $0x58] sm:$0xff] %v638
    %962 = vst [vmem:[#allocation7 + $0x60] sm:$0xff] %v639
    %963 = vst [vmem:[#allocation7 + $0x68] sm:$0xff] %v640
    %964 = vst [vmem:[#allocation7 + $0x70] sm:$0xff] %v641
    %965 = vst [vmem:[#allocation7 + $0x78] sm:$0xff] %v642
    %966 = vst [vmem:[#allocation8] sm:$0xff] %v739
    %967 = vst [vmem:[#allocation8 + $0x8] sm:$0xff] %v753
    %968 = vst [vmem:[#allocation8 + $0x10] sm:$0xff] %v767
    %969 = vst [vmem:[#allocation8 + $0x18] sm:$0xff] %v781
    %970 = vst [vmem:[#allocation8 + $0x20] sm:$0xff] %v795
    %971 = vst [vmem:[#allocation8 + $0x28] sm:$0xff] %v809
    %972 = vst [vmem:[#allocation8 + $0x30] sm:$0xff] %v823
    %973 = vst [vmem:[#allocation8 + $0x38] sm:$0xff] %v837
    %974 = vst [vmem:[#allocation8 + $0x40] sm:$0xff] %v851
    %975 = vst [vmem:[#allocation8 + $0x48] sm:$0xff] %v865
    %976 = vst [vmem:[#allocation8 + $0x50] sm:$0xff] %v879
    %977 = vst [vmem:[#allocation8 + $0x58] sm:$0xff] %v893
    %978 = vst [vmem:[#allocation8 + $0x60] sm:$0xff] %v907
    %979 = vst [vmem:[#allocation8 + $0x68] sm:$0xff] %v921
    %980 = vst [vmem:[#allocation8 + $0x70] sm:$0xff] %v935
    %981 = vst [vmem:[#allocation8 + $0x78] sm:$0xff] %v949
    // Predicated region
    $region38: #{_forward_impl.1} parent=1 // pred_check
      _
    $region39: #{_forward_impl.1} parent=1 // pred_check_branch
      %983 = sbr.rel (0) target = $region41
    $region40: #{_forward_impl.1} parent=1 // pred_region
      %s985 = ssub.s32 2048, 2048
      %986 = vsyncadd [#allocation4], %s985
      %s987 = sshll.u32 [#allocation7], 4
      %s988 = int_to_ptr.vmem [resolvable:$true] %s987
      %993 = dma.vmem_to_hbm [thread:$0]  %s988, 2048, %s7, [#allocation4], 128, 128, 8
    $region41: #{_forward_impl.1} parent=1 // pred_fallthru
      _
    // Predicated region
    $region42: #{_forward_impl.1} parent=1 // pred_check
      _
    $region43: #{_forward_impl.1} parent=1 // pred_check_branch
      %995 = sbr.rel (0) target = $region45
    $region44: #{_forward_impl.1} parent=1 // pred_region
      %s997 = ssub.s32 2048, 2048
      %998 = vsyncadd [#allocation9], %s997
      %s999 = sshll.u32 [#allocation8], 4
      %s1000 = int_to_ptr.vmem [resolvable:$true] %s999
      %1005 = dma.vmem_to_hbm [thread:$0]  %s1000, 2048, %s8, [#allocation9], 128, 128, 8
    $region45: #{_forward_impl.1} parent=1 // pred_fallthru
      _
    // Predicated region
    $region46: #{_forward_impl.1} parent=1 // pred_check
      _
    $region47: #{_forward_impl.1} parent=1 // pred_check_branch
      %1007 = sbr.rel (0) target = $region49
    $region48: #{_forward_impl.1} parent=1 // pred_region
      %1008 = dma.done [#allocation4], 2048
    $region49: #{_forward_impl.1} parent=1 // pred_fallthru
      _
    // Predicated region
    $region50: #{_forward_impl.1} parent=1 // pred_check
      _
    $region51: #{_forward_impl.1} parent=1 // pred_check_branch
      %1010 = sbr.rel (0) target = $region53
    $region52: #{_forward_impl.1} parent=1 // pred_region
      %1011 = dma.done [#allocation9], 2048
    $region53: #{_forward_impl.1} parent=1 // pred_fallthru
      _
    %1012 = vsyncpa [#allocation3], 1
    %1013 = vsyncpa [#allocation6], 1
    %1014 = vsyncpa [#allocation4], 1
    %1015 = vsyncpa [#allocation9], 1

</llo_original>
